<compile_context>
chip_gen: v7x
topology: tpu7x:2x2x1
jax: 0.10.0
libtpu: 0.0.40
codegen_flags: <defaults>
</compile_context>

<pallas_src>
import functools

import numpy as np
import jax
import jax.numpy as jnp
from jax.experimental import pallas as pl
from jax.experimental.pallas import tpu as pltpu


def _round_up(x: int, m: int) -> int:
    return ((x + m - 1) // m) * m


def _median_bias(n: int) -> float:
    """scipy / ml4gw median-bias correction used for Welch median averaging."""
    ii_2 = 2.0 * np.arange(1.0, (n - 1) // 2 + 1)
    return float(1.0 + np.sum(1.0 / (ii_2 + 1.0) - 1.0 / ii_2))


def _batcher_pairs(n: int):
    """Compare-exchange pairs of Batcher's odd-even merge sort (n = power of 2)."""
    pairs = []
    p = 1
    while p < n:
        k = p
        while k >= 1:
            j = k % p
            while j <= n - 1 - k:
                for i in range(min(k - 1, n - j - k - 1) + 1):
                    if (i + j) // (p * 2) == (i + j + k) // (p * 2):
                        pairs.append((i + j, i + j + k))
                j += 2 * k
            k //= 2
        p *= 2
    return pairs


def _pruned_batcher_pairs(n: int, needed_ranks):
    """Batcher network pruned (backwards reachability) to the comparators that
    can influence the requested output ranks (median selection network)."""
    pairs = _batcher_pairs(n)
    needed = set(needed_ranks)
    kept = []
    for a, b in reversed(pairs):
        if a in needed or b in needed:
            kept.append((a, b))
            needed.add(a)
            needed.add(b)
    kept.reverse()
    return kept


def _psd_kernel(frames_ref, dft_ref, psd_ref, *, num_windows, c_pad, tile_f, average):
    """One frequency tile of the Welch PSD.

    frames_ref : (W*c_pad, nperseg)  detrended frames (window folded into DFT),
                                     row = w*c_pad + c; same block every step.
    dft_ref    : (nperseg, 2*tile_f) [cos_tile | sin_tile] columns with the Hann
                                     window, one-sided factor, Welch scale and
                                     1/norm already folded in.
    psd_ref    : (c_pad, tile_f)     output tile (lane-dense, padded freqs = 0).
    """
    dft = dft_ref[...]
    frames = frames_ref[...]

    # Single MXU matmul: all windows stacked on M, cos|sin concatenated on N.
    out = jnp.dot(frames, dft, preferred_element_type=jnp.float32)   # (W*Cp, 2T)
    re = out[:, :tile_f]
    im = out[:, tile_f:]
    powers = re * re + im * im                                       # (W*Cp, T)

    if average == "mean":
        # 1/num_windows already folded into the DFT columns.
        vals = [powers[w * c_pad:(w + 1) * c_pad, :] for w in range(num_windows)]
        while len(vals) > 1:                                         # tree reduce
            nxt = [vals[i] + vals[i + 1] for i in range(0, len(vals) - 1, 2)]
            if len(vals) % 2:
                nxt.append(vals[-1])
            vals = nxt
        psd_ref[...] = vals[0]
    else:
        # Median across windows via a rank-pruned Batcher odd-even-merge network,
        # padded to a power of two with +inf sentinels, evaluated per 128-lane
        # frequency chunk to bound vreg pressure (no spills -> no vst saturation).
        n = num_windows
        size = 1 if n == 1 else 1 << (n - 1).bit_length()
        ranks = (n // 2,) if n % 2 else (n // 2 - 1, n // 2)
        pairs = _pruned_batcher_pairs(size, ranks)
        for c0 in range(0, tile_f, 128):
            chunk = powers[:, c0:c0 + 128]
            vals = [chunk[w * c_pad:(w + 1) * c_pad, :] for w in range(n)]
            if size > n:
                pad = jnp.full_like(vals[0], jnp.inf)
                vals = vals + [pad] * (size - n)
            for a, b in pairs:
                lo = jnp.minimum(vals[a], vals[b])
                hi = jnp.maximum(vals[a], vals[b])
                vals[a], vals[b] = lo, hi
            if n % 2:
                agg = vals[n // 2]
            else:
                agg = 0.5 * (vals[n // 2 - 1] + vals[n // 2])
            # 1/median_bias already folded into the DFT columns.
            psd_ref[:, c0:c0 + 128] = agg


class SpectralDensity:
    """JAX/Pallas port of ml4gw SpectralDensity (Welch PSD)."""

    def __init__(self, sample_rate, fftlength, overlap=None, average="median",
                 window=None, fast=True, dft_dtype=jnp.bfloat16):
        if average not in ("mean", "median"):
            raise ValueError(f"Unknown average method {average}")
        self.sample_rate = float(sample_rate)
        self.nperseg = int(fftlength * sample_rate)
        if overlap is None:
            overlap = fftlength / 2
        self.nstride = self.nperseg - int(overlap * sample_rate)
        self.average = average
        # TODO(synk): ml4gw's fast=True FFT-reuse algorithm (inaccurate in the
        # two lowest bins) is not replicated; the accurate Welch path is used.
        self.fast = fast
        # bf16 DFT/frames: native MXU dtype, halves HBM/VMEM traffic (~1e-3 rel
        # error). Pass dft_dtype=jnp.float32 for the exact f32 path.
        self.dft_dtype = dft_dtype

        if window is None:
            # torch.hann_window (periodic)
            nwin = np.arange(self.nperseg, dtype=np.float64)
            window = 0.5 * (1.0 - np.cos(2.0 * np.pi * nwin / self.nperseg))
        window = np.asarray(window, dtype=np.float64).reshape(-1)
        assert window.shape[0] == self.nperseg
        scale = 1.0 / (self.sample_rate * float((window ** 2).sum()))

        self.nfreq = self.nperseg // 2 + 1

        # Per-generation VMEM capacity (v5e/v6e: 128 MiB, v7x: 64 MiB per core).
        try:
            self._vmem_cap = int(pltpu.get_tpu_info().vmem_capacity_bytes)
        except Exception:
            self._vmem_cap = 64 * 1024 * 1024   # conservative (v7x per-core)

        # Lane-dense frequency tiling: pad nfreq up to a multiple of the tile.
        f_pad128 = _round_up(self.nfreq, 128)
        tile_cap = 512 if self._vmem_cap >= (96 << 20) else 256
        self.tile_f = min(tile_cap, f_pad128)
        self.f_pad = _round_up(self.nfreq, self.tile_f)
        self.n_tiles = self.f_pad // self.tile_f

        nn = np.arange(self.nperseg, dtype=np.float64)[:, None]
        kk = np.arange(self.nfreq, dtype=np.float64)[None, :]
        ang = 2.0 * np.pi * nn * kk / self.nperseg
        # Hann window folded into the DFT rows: (F ⊙ w) @ D == F @ (diag(w)·D).
        self._base_cos = window[:, None] * np.cos(ang)          # (nperseg, nfreq)
        self._base_sin = window[:, None] * (-np.sin(ang))

        fac = np.ones(self.nfreq, dtype=np.float64)             # one-sided factor
        if self.nperseg % 2:
            fac[1:] = 2.0
        else:
            fac[1:-1] = 2.0
        self._col_scale = fac * scale
        self._dft_cache = {}
        self._single_buffer_ok = None

    def _get_dft(self, num_windows: int):
        """DFT RHS with window + all scaling folded in, arranged per-tile [cos|sin]."""
        dft = self._dft_cache.get(num_windows)
        if dft is not None:
            return dft
        if self.average == "mean":
            norm = float(num_windows)
        else:
            norm = _median_bias(num_windows)
        col = np.sqrt(self._col_scale / norm)                    # (nfreq,)
        cos_p = np.zeros((self.nperseg, self.f_pad), dtype=np.float64)
        sin_p = np.zeros((self.nperseg, self.f_pad), dtype=np.float64)
        cos_p[:, :self.nfreq] = self._base_cos * col
        sin_p[:, :self.nfreq] = self._base_sin * col
        cos_t = cos_p.reshape(self.nperseg, self.n_tiles, 1, self.tile_f)
        sin_t = sin_p.reshape(self.nperseg, self.n_tiles, 1, self.tile_f)
        dft_np = np.concatenate([cos_t, sin_t], axis=2).reshape(
            self.nperseg, self.n_tiles * 2 * self.tile_f)
        dft = jnp.asarray(dft_np, dtype=self.dft_dtype)
        self._dft_cache[num_windows] = dft
        return dft

    def _vmem_limit(self, num_windows: int, c_pad: int) -> int:
        """Scoped-VMEM budget from the actual working set, clamped to capacity."""
        d = np.dtype(self.dft_dtype).itemsize
        frames_b = 2 * num_windows * c_pad * self.nperseg * d    # (worst case 2 bufs)
        dft_b = 2 * self.nperseg * 2 * self.tile_f * d           # double-buffered tile
        out_b = 2 * c_pad * self.tile_f * 4
        interm_b = num_windows * c_pad * 3 * self.tile_f * 4     # MXU out + |.|^2
        need = frames_b + dft_b + out_b + interm_b
        limit = max(int(need * 1.5) + (16 << 20), 32 << 20)
        return min(limit, max(self._vmem_cap - (2 << 20), 32 << 20))

    def _run(self, frames, dft, num_windows, c_pad, single_buffer):
        kernel = functools.partial(
            _psd_kernel, num_windows=num_windows, c_pad=c_pad,
            tile_f=self.tile_f, average=self.average)
        frames_kwargs = {"pipeline_mode": pl.Buffered(1)} if single_buffer else {}
        return pl.pallas_call(
            kernel,
            out_shape=jax.ShapeDtypeStruct((c_pad, self.f_pad), jnp.float32),
            grid=(self.n_tiles,),
            in_specs=[
                # frames: same block on every grid step -> resident, single buffer
                pl.BlockSpec((num_windows * c_pad, self.nperseg),
                             lambda f: (0, 0), **frames_kwargs),
                # DFT tile streamed / double-buffered over the frequency grid axis
                pl.BlockSpec((self.nperseg, 2 * self.tile_f), lambda f: (0, f)),
            ],
            out_specs=pl.BlockSpec((c_pad, self.tile_f), lambda f: (0, f)),
            compiler_params=pltpu.CompilerParams(
                dimension_semantics=("parallel",),
                vmem_limit_bytes=self._vmem_limit(num_windows, c_pad),
            ),
        )(frames, dft)

    def __call__(self, x):
        # TODO(synk): reference casts to float64; TPU Pallas has no f64 -> f32.
        x = jnp.asarray(x, dtype=jnp.float32)
        lead_shape = x.shape[:-1]
        t = x.shape[-1]
        c = int(np.prod(lead_shape)) if lead_shape else 1
        x2d = x.reshape(c, t)
        num_windows = (t - self.nperseg) // self.nstride + 1
        c_pad = _round_up(c, 8)      # sublane-aligned per-window slices + full vst

        # One fused gather for the overlapping frames; constant detrend hoisted
        # here (fuses with the gather) instead of re-running per frequency tile.
        idx = (np.arange(num_windows)[:, None] * self.nstride
               + np.arange(self.nperseg)[None, :])                # (W, nperseg)
        frames = x2d[:, idx]                                      # (C, W, nperseg)
        frames = jnp.transpose(frames, (1, 0, 2))                 # (W, C, nperseg)
        frames = frames - jnp.mean(frames, axis=-1, keepdims=True)  # detrend (f32)
        if c_pad > c:
            frames = jnp.pad(frames, ((0, 0), (0, c_pad - c), (0, 0)))
        frames = frames.reshape(num_windows * c_pad, self.nperseg)
        frames = frames.astype(self.dft_dtype)                    # bf16 MXU input

        dft = self._get_dft(num_windows)

        if self._single_buffer_ok is None:
            try:
                psd_pad = jax.block_until_ready(
                    self._run(frames, dft, num_windows, c_pad, True))
                self._single_buffer_ok = True
            except Exception:
                # pipeline_mode=pl.Buffered(1) not supported here: fall back.
                self._single_buffer_ok = False
                psd_pad = self._run(frames, dft, num_windows, c_pad, False)
        else:
            psd_pad = self._run(frames, dft, num_windows, c_pad,
                                self._single_buffer_ok)

        psd = psd_pad[:c, :self.nfreq]            # drop channel/lane padding
        return psd.reshape(*lead_shape, self.nfreq)


class PsdEstimator:
    """JAX/Pallas port of buoy PsdEstimator.forward."""

    def __init__(self, length, sample_rate, fftlength, window=None,
                 overlap=None, average="median", fast=True,
                 dft_dtype=jnp.bfloat16):
        self.size = int(length * sample_rate)
        self.spectral_density = SpectralDensity(
            sample_rate, fftlength, overlap, average, window=window, fast=fast,
            dft_dtype=dft_dtype)

    def __call__(self, X):
        split = X.shape[-1] - self.size
        background, X_out = X[..., :split], X[..., split:]
        if X.ndim == 3 and X.shape[0] == 2:
            background = background[0]
            X_out = X_out[1]
        psds = self.spectral_density(background)
        return X_out, psds


def _ref_psd(bg, window, nperseg, nstride, scale, average, num_windows):
    """NumPy Welch reference for the cross-check."""
    frames = np.stack(
        [bg[:, w * nstride:w * nstride + nperseg] for w in range(num_windows)],
        axis=1)
    frames = frames - frames.mean(-1, keepdims=True)
    frames = frames * window
    fft = np.abs(np.fft.rfft(frames, axis=-1)) ** 2
    if nperseg % 2:
        fft[..., 1:] *= 2
    else:
        fft[..., 1:-1] *= 2
    fft *= scale
    if average == "mean":
        return fft.mean(axis=1)
    return np.median(fft, axis=1) / _median_bias(num_windows)


if __name__ == "__main__":
    sample_rate = 32.0
    fftlength = 2.0      # nperseg = 64, nfreq = 33
    length = 2.0         # size (tail) = 64 samples

    key = jax.random.PRNGKey(0)
    # (batch=2, channels=4, time=320): batch==2 exercises the [0]/[1] branch.
    X = jax.random.normal(key, (2, 4, 320), dtype=jnp.float32)

    est = PsdEstimator(length, sample_rate, fftlength, average="median", fast=True)
    X_tail, psds = est(X)
    jax.block_until_ready((X_tail, psds))

    assert X_tail.shape == (4, int(length * sample_rate)), X_tail.shape
    assert psds.shape == (4, int(fftlength * sample_rate) // 2 + 1), psds.shape

    # numerical cross-check against a NumPy Welch reference
    nperseg = int(fftlength * sample_rate)
    nstride = nperseg - int((fftlength / 2) * sample_rate)
    n = np.arange(nperseg, dtype=np.float64)
    window = 0.5 * (1.0 - np.cos(2.0 * np.pi * n / nperseg))
    scale = 1.0 / (sample_rate * (window ** 2).sum())
    bg = np.asarray(X[0, :, : X.shape[-1] - est.size], dtype=np.float64)
    num_windows = (bg.shape[-1] - nperseg) // nstride + 1

    ref_med = _ref_psd(bg, window, nperseg, nstride, scale, "median", num_windows)
    # default bf16 MXU path: small (~1e-3) relative error vs f64 reference
    np.testing.assert_allclose(np.asarray(psds), ref_med, rtol=5e-2, atol=1e-6)

    # mean-average path (bf16)
    est_mean = PsdEstimator(length, sample_rate, fftlength, average="mean", fast=True)
    _, psds_mean = est_mean(X)
    jax.block_until_ready(psds_mean)
    ref_mean = _ref_psd(bg, window, nperseg, nstride, scale, "mean", num_windows)
    np.testing.assert_allclose(np.asarray(psds_mean), ref_mean, rtol=5e-2, atol=1e-6)

    # exact-algorithm check on the f32 DFT path (tighter tolerance)
    est_f32 = PsdEstimator(length, sample_rate, fftlength, average="median",
                           fast=True, dft_dtype=jnp.float32)
    _, psds_f32 = est_f32(X)
    jax.block_until_ready(psds_f32)
    np.testing.assert_allclose(np.asarray(psds_f32), ref_med, rtol=1e-2, atol=1e-6)

    print("KERNEL_OK")
</pallas_src>

<mosaic_0001>
module attributes {stable_mosaic.version = 11 : i64} {
  func.func @_psd_kernel(%arg0: i32, %arg1: memref<56x64xbf16, #tpu.memory_space<vmem>>, %arg2: memref<64x256xbf16, #tpu.memory_space<vmem>>, %arg3: memref<8x128xf32, #tpu.memory_space<vmem>>) attributes {dimension_semantics = [#tpu.dimension_semantics<parallel>], iteration_bounds = array<i64: 1>, scalar_prefetch = 0 : i64, scratch_operands = 0 : i64, tpu.core_type = #tpu.core_type<tc>, window_params = [{pipeline_mode = #tpu.pipeline_mode<synchronous>, transform_indices = @transform_0, window_bounds = array<i64: 56, 64>}, {transform_indices = @transform_1, window_bounds = array<i64: 64, 256>}, {transform_indices = @transform_2, window_bounds = array<i64: 8, 128>}]} {
    %c0 = arith.constant 0 : index
    %c0_0 = arith.constant 0 : index
    %0 = vector.load %arg2[%c0, %c0_0] : memref<64x256xbf16, #tpu.memory_space<vmem>>, vector<64x256xbf16>
    %c0_1 = arith.constant 0 : index
    %c0_2 = arith.constant 0 : index
    %1 = vector.load %arg1[%c0_1, %c0_2] : memref<56x64xbf16, #tpu.memory_space<vmem>>, vector<56x64xbf16>
    %cst = arith.constant dense<0.000000e+00> : vector<56x256xf32>
    %2 = tpu.matmul %1, %0, %cst {dimension_numbers = #tpu.dot_dimension_numbers<[1], [0], [0], [1], [0, 0, 1, 1], [], []>} : vector<56x64xbf16>, vector<64x256xbf16>, vector<56x256xf32> -> vector<56x256xf32>
    %3 = vector.extract_strided_slice %2 {offsets = [0, 0], sizes = [56, 128], strides = [1, 1]} : vector<56x256xf32> to vector<56x128xf32>
    %4 = vector.extract_strided_slice %2 {offsets = [0, 128], sizes = [56, 128], strides = [1, 1]} : vector<56x256xf32> to vector<56x128xf32>
    %5 = arith.mulf %3, %3 : vector<56x128xf32>
    %6 = arith.mulf %4, %4 : vector<56x128xf32>
    %7 = arith.addf %5, %6 : vector<56x128xf32>
    %8 = vector.extract_strided_slice %7 {offsets = [0, 0], sizes = [8, 128], strides = [1, 1]} : vector<56x128xf32> to vector<8x128xf32>
    %9 = vector.extract_strided_slice %7 {offsets = [8, 0], sizes = [8, 128], strides = [1, 1]} : vector<56x128xf32> to vector<8x128xf32>
    %10 = vector.extract_strided_slice %7 {offsets = [16, 0], sizes = [8, 128], strides = [1, 1]} : vector<56x128xf32> to vector<8x128xf32>
    %11 = vector.extract_strided_slice %7 {offsets = [24, 0], sizes = [8, 128], strides = [1, 1]} : vector<56x128xf32> to vector<8x128xf32>
    %12 = vector.extract_strided_slice %7 {offsets = [32, 0], sizes = [8, 128], strides = [1, 1]} : vector<56x128xf32> to vector<8x128xf32>
    %13 = vector.extract_strided_slice %7 {offsets = [40, 0], sizes = [8, 128], strides = [1, 1]} : vector<56x128xf32> to vector<8x128xf32>
    %14 = vector.extract_strided_slice %7 {offsets = [48, 0], sizes = [8, 128], strides = [1, 1]} : vector<56x128xf32> to vector<8x128xf32>
    %cst_3 = arith.constant 0x7F800000 : f32
    %15 = vector.broadcast %cst_3 : f32 to vector<8x128xf32>
    %16 = arith.minimumf %8, %9 : vector<8x128xf32>
    %17 = arith.maximumf %8, %9 : vector<8x128xf32>
    %18 = arith.minimumf %10, %11 : vector<8x128xf32>
    %19 = arith.maximumf %10, %11 : vector<8x128xf32>
    %20 = arith.minimumf %12, %13 : vector<8x128xf32>
    %21 = arith.maximumf %12, %13 : vector<8x128xf32>
    %22 = arith.minimumf %14, %15 : vector<8x128xf32>
    %23 = arith.maximumf %14, %15 : vector<8x128xf32>
    %24 = arith.minimumf %16, %18 : vector<8x128xf32>
    %25 = arith.maximumf %16, %18 : vector<8x128xf32>
    %26 = arith.minimumf %17, %19 : vector<8x128xf32>
    %27 = arith.maximumf %17, %19 : vector<8x128xf32>
    %28 = arith.minimumf %20, %22 : vector<8x128xf32>
    %29 = arith.maximumf %20, %22 : vector<8x128xf32>
    %30 = arith.minimumf %21, %23 : vector<8x128xf32>
    %31 = arith.maximumf %21, %23 : vector<8x128xf32>
    %32 = arith.minimumf %26, %25 : vector<8x128xf32>
    %33 = arith.maximumf %26, %25 : vector<8x128xf32>
    %34 = arith.minimumf %30, %29 : vector<8x128xf32>
    %35 = arith.maximumf %30, %29 : vector<8x128xf32>
    %36 = arith.maximumf %24, %28 : vector<8x128xf32>
    %37 = arith.maximumf %32, %34 : vector<8x128xf32>
    %38 = arith.minimumf %33, %35 : vector<8x128xf32>
    %39 = arith.minimumf %27, %31 : vector<8x128xf32>
    %40 = arith.maximumf %38, %36 : vector<8x128xf32>
    %41 = arith.minimumf %39, %37 : vector<8x128xf32>
    %42 = arith.minimumf %41, %40 : vector<8x128xf32>
    %c0_4 = arith.constant 0 : index
    %c0_5 = arith.constant 0 : index
    %43 = vector.load %arg3[%c0_4, %c0_5] : memref<8x128xf32, #tpu.memory_space<vmem>>, vector<8x128xf32>
    tpu.vector_store %arg3[%c0_4, %c0_5], %42 {strides = array<i32>} : memref<8x128xf32, #tpu.memory_space<vmem>>, vector<8x128xf32>,
    return
  }
  func.func @transform_0(%arg0: i32) -> (i32, i32) {
    %c0_i32 = arith.constant 0 : i32
    %c0_i32_0 = arith.constant 0 : i32
    %c0_i32_1 = arith.constant 0 : i32
    return %c0_i32, %c0_i32_0 : i32, i32
  }
  func.func @transform_1(%arg0: i32) -> (i32, i32) {
    %c0_i32 = arith.constant 0 : i32
    %c0_i32_0 = arith.constant 0 : i32
    return %c0_i32, %arg0 : i32, i32
  }
  func.func @transform_2(%arg0: i32) -> (i32, i32) {
    %c0_i32 = arith.constant 0 : i32
    %c0_i32_0 = arith.constant 0 : i32
    return %c0_i32, %arg0 : i32, i32
  }
}

module attributes {stable_mosaic.version = 11 : i64} {
  func.func @_psd_kernel(%arg0: i32, %arg1: memref<56x64xbf16, #tpu.memory_space<vmem>>, %arg2: memref<64x256xbf16, #tpu.memory_space<vmem>>, %arg3: memref<8x128xf32, #tpu.memory_space<vmem>>) attributes {dimension_semantics = [#tpu.dimension_semantics<parallel>], iteration_bounds = array<i64: 1>, scalar_prefetch = 0 : i64, scratch_operands = 0 : i64, tpu.core_type = #tpu.core_type<tc>, window_params = [{pipeline_mode = #tpu.pipeline_mode<synchronous>, transform_indices = @transform_0, window_bounds = array<i64: 56, 64>}, {transform_indices = @transform_1, window_bounds = array<i64: 64, 256>}, {transform_indices = @transform_2, window_bounds = array<i64: 8, 128>}]} {
    %c0 = arith.constant 0 : index
    %c0_0 = arith.constant 0 : index
    %0 = vector.load %arg2[%c0, %c0_0] : memref<64x256xbf16, #tpu.memory_space<vmem>>, vector<64x256xbf16>
    %c0_1 = arith.constant 0 : index
    %c0_2 = arith.constant 0 : index
    %1 = vector.load %arg1[%c0_1, %c0_2] : memref<56x64xbf16, #tpu.memory_space<vmem>>, vector<56x64xbf16>
    %cst = arith.constant dense<0.000000e+00> : vector<56x256xf32>
    %2 = tpu.matmul %1, %0, %cst {dimension_numbers = #tpu.dot_dimension_numbers<[1], [0], [0], [1], [0, 0, 1, 1], [], []>} : vector<56x64xbf16>, vector<64x256xbf16>, vector<56x256xf32> -> vector<56x256xf32>
    %3 = vector.extract_strided_slice %2 {offsets = [0, 0], sizes = [56, 128], strides = [1, 1]} : vector<56x256xf32> to vector<56x128xf32>
    %4 = vector.extract_strided_slice %2 {offsets = [0, 128], sizes = [56, 128], strides = [1, 1]} : vector<56x256xf32> to vector<56x128xf32>
    %5 = arith.mulf %3, %3 : vector<56x128xf32>
    %6 = arith.mulf %4, %4 : vector<56x128xf32>
    %7 = arith.addf %5, %6 : vector<56x128xf32>
    %8 = vector.extract_strided_slice %7 {offsets = [0, 0], sizes = [8, 128], strides = [1, 1]} : vector<56x128xf32> to vector<8x128xf32>
    %9 = vector.extract_strided_slice %7 {offsets = [8, 0], sizes = [8, 128], strides = [1, 1]} : vector<56x128xf32> to vector<8x128xf32>
    %10 = vector.extract_strided_slice %7 {offsets = [16, 0], sizes = [8, 128], strides = [1, 1]} : vector<56x128xf32> to vector<8x128xf32>
    %11 = vector.extract_strided_slice %7 {offsets = [24, 0], sizes = [8, 128], strides = [1, 1]} : vector<56x128xf32> to vector<8x128xf32>
    %12 = vector.extract_strided_slice %7 {offsets = [32, 0], sizes = [8, 128], strides = [1, 1]} : vector<56x128xf32> to vector<8x128xf32>
    %13 = vector.extract_strided_slice %7 {offsets = [40, 0], sizes = [8, 128], strides = [1, 1]} : vector<56x128xf32> to vector<8x128xf32>
    %14 = vector.extract_strided_slice %7 {offsets = [48, 0], sizes = [8, 128], strides = [1, 1]} : vector<56x128xf32> to vector<8x128xf32>
    %cst_3 = arith.constant 0x7F800000 : f32
    %15 = vector.broadcast %cst_3 : f32 to vector<8x128xf32>
    %16 = arith.minimumf %8, %9 : vector<8x128xf32>
    %17 = arith.maximumf %8, %9 : vector<8x128xf32>
    %18 = arith.minimumf %10, %11 : vector<8x128xf32>
    %19 = arith.maximumf %10, %11 : vector<8x128xf32>
    %20 = arith.minimumf %12, %13 : vector<8x128xf32>
    %21 = arith.maximumf %12, %13 : vector<8x128xf32>
    %22 = arith.minimumf %14, %15 : vector<8x128xf32>
    %23 = arith.maximumf %14, %15 : vector<8x128xf32>
    %24 = arith.minimumf %16, %18 : vector<8x128xf32>
    %25 = arith.maximumf %16, %18 : vector<8x128xf32>
    %26 = arith.minimumf %17, %19 : vector<8x128xf32>
    %27 = arith.maximumf %17, %19 : vector<8x128xf32>
    %28 = arith.minimumf %20, %22 : vector<8x128xf32>
    %29 = arith.maximumf %20, %22 : vector<8x128xf32>
    %30 = arith.minimumf %21, %23 : vector<8x128xf32>
    %31 = arith.maximumf %21, %23 : vector<8x128xf32>
    %32 = arith.minimumf %26, %25 : vector<8x128xf32>
    %33 = arith.maximumf %26, %25 : vector<8x128xf32>
    %34 = arith.minimumf %30, %29 : vector<8x128xf32>
    %35 = arith.maximumf %30, %29 : vector<8x128xf32>
    %36 = arith.maximumf %24, %28 : vector<8x128xf32>
    %37 = arith.maximumf %32, %34 : vector<8x128xf32>
    %38 = arith.minimumf %33, %35 : vector<8x128xf32>
    %39 = arith.minimumf %27, %31 : vector<8x128xf32>
    %40 = arith.maximumf %38, %36 : vector<8x128xf32>
    %41 = arith.minimumf %39, %37 : vector<8x128xf32>
    %42 = arith.minimumf %41, %40 : vector<8x128xf32>
    %c0_4 = arith.constant 0 : index
    %c0_5 = arith.constant 0 : index
    %43 = vector.load %arg3[%c0_4, %c0_5] : memref<8x128xf32, #tpu.memory_space<vmem>>, vector<8x128xf32>
    tpu.vector_store %arg3[%c0_4, %c0_5], %42 {strides = array<i32>} : memref<8x128xf32, #tpu.memory_space<vmem>>, vector<8x128xf32>,
    return
  }
  func.func @transform_0(%arg0: i32) -> (i32, i32) {
    %c0_i32 = arith.constant 0 : i32
    %c0_i32_0 = arith.constant 0 : i32
    %c0_i32_1 = arith.constant 0 : i32
    return %c0_i32, %c0_i32_0 : i32, i32
  }
  func.func @transform_1(%arg0: i32) -> (i32, i32) {
    %c0_i32 = arith.constant 0 : i32
    %c0_i32_0 = arith.constant 0 : i32
    return %c0_i32, %arg0 : i32, i32
  }
  func.func @transform_2(%arg0: i32) -> (i32, i32) {
    %c0_i32 = arith.constant 0 : i32
    %c0_i32_0 = arith.constant 0 : i32
    return %c0_i32, %arg0 : i32, i32
  }
}

</mosaic_0001>

<llo_original>
// kernel: tpu_custom_call.1
$region0: #{tpu_custom_call.1}
  #allocation0 [shape = 'u32[]', space=smem, size = 0x4, offset = 0x4, fixed_abs, tag = 'smem constant byte address 0x4 - core index']
  #allocation1 [shape = 'u32[144,128]{1,0:T(1,128)}', space=vmem, size = 0x12000, scoped, tag = 'internal scratch']
  %s0 = inlined_call_operand.hbm [shape: bf16[56,64], index: 0, kind: input, shape index: {}]
  %s1 = inlined_call_operand.hbm [shape: bf16[64,256], index: 1, kind: input, shape index: {}]
  %s2 = inlined_call_operand.hbm [shape: f32[8,128], index: 2, kind: output, shape index: {}]
  %s3 = sld [smem:[#allocation0]]
  $region26: #{tpu_custom_call.1} parent=0
    _
  %s5 = ssub.s32 1, %s3
  %s6 = scalar_select 0, %s5, %s3
  $region1: #{tpu_custom_call.1} parent=0
    #allocation2 [shape = 'u8[14336]{0}', space=vmem, size = 0x3800, scoped, tag = 'input window, operand 0, single buffered']
    #allocation3 [shape = 's32[1]{0}', space=sflag, size = 0x4, scoped, tag = 'scoped memory for tpu_custom_call.1']
    #allocation4 [shape = 's32[1]{0}', space=sflag, size = 0x4, scoped, tag = 'scoped memory for tpu_custom_call.1']
    #allocation5 [shape = 'u8[32768]{0}', space=vmem, size = 0x8000, scoped, tag = 'input window, operand 1, single buffered']
    #allocation6 [shape = 's32[1]{0}', space=sflag, size = 0x4, scoped, tag = 'scoped memory for tpu_custom_call.1']
    #allocation7 [shape = 'u8[4096]{0}', space=vmem, size = 0x1000, scoped, tag = 'output window, operand 0, single buffered']
    %7 = vsyncpa [#allocation3], 0
    %8 = vsyncpa [#allocation6], 0
    %9 = vsyncpa [#allocation4], 0
    // Predicated region
    $region2: #{tpu_custom_call.1} parent=1 // pred_check
      _
    $region3: #{tpu_custom_call.1} parent=1 // pred_check_branch
      %11 = sbr.rel (0) target = $region5
    $region4: #{tpu_custom_call.1} parent=1 // pred_region
      %s13 = ssub.s32 448, 448
      %14 = vsyncadd [#allocation3], %s13
      %s15 = sshll.u32 [#allocation2], 4
      %s16 = int_to_ptr.vmem [resolvable:$true] %s15
      %21 = dma.hbm_to_vmem [thread:$0]  %s0, 448, %s16, [#allocation3], 64, 64, 4
    $region5: #{tpu_custom_call.1} parent=1 // pred_fallthru
      _
    // Predicated region
    $region6: #{tpu_custom_call.1} parent=1 // pred_check
      _
    $region7: #{tpu_custom_call.1} parent=1 // pred_check_branch
      %23 = sbr.rel (0) target = $region9
    $region8: #{tpu_custom_call.1} parent=1 // pred_region
      %s25 = ssub.s32 1024, 1024
      %26 = vsyncadd [#allocation6], %s25
      %s27 = sshll.u32 [#allocation5], 4
      %s28 = int_to_ptr.vmem [resolvable:$true] %s27
      %33 = dma.hbm_to_vmem [thread:$0]  %s1, 1024, %s28, [#allocation6], 128, 128, 8
    $region9: #{tpu_custom_call.1} parent=1 // pred_fallthru
      _
    // Predicated region
    $region10: #{tpu_custom_call.1} parent=1 // pred_check
      _
    $region11: #{tpu_custom_call.1} parent=1 // pred_check_branch
      %35 = sbr.rel (0) target = $region13
    $region12: #{tpu_custom_call.1} parent=1 // pred_region
      %36 = dma.done [#allocation3], 448
    $region13: #{tpu_custom_call.1} parent=1 // pred_fallthru
      _
    // Predicated region
    $region14: #{tpu_custom_call.1} parent=1 // pred_check
      _
    $region15: #{tpu_custom_call.1} parent=1 // pred_check_branch
      %38 = sbr.rel (0) target = $region17
    $region16: #{tpu_custom_call.1} parent=1 // pred_region
      %39 = dma.done [#allocation6], 1024
    $region17: #{tpu_custom_call.1} parent=1 // pred_fallthru
      _
    %v41 = vld [vmem:[#allocation5] sm:$0xff]
    %v42 = vld [vmem:[#allocation5 + $0x8] sm:$0xff]
    %v43 = vld [vmem:[#allocation5 + $0x10] sm:$0xff]
    %v44 = vld [vmem:[#allocation5 + $0x18] sm:$0xff]
    %v45 = vld [vmem:[#allocation5 + $0x20] sm:$0xff]
    %v46 = vld [vmem:[#allocation5 + $0x28] sm:$0xff]
    %v47 = vld [vmem:[#allocation5 + $0x30] sm:$0xff]
    %v48 = vld [vmem:[#allocation5 + $0x38] sm:$0xff]
    %v49 = vld [vmem:[#allocation2] sm:$0xf]
    %v50 = vld [vmem:[#allocation2 + $0x4] sm:$0xf]
    %v51 = vld [vmem:[#allocation2 + $0x8] sm:$0xf]
    %v52 = vld [vmem:[#allocation2 + $0xc] sm:$0xf]
    %v53 = vld [vmem:[#allocation2 + $0x10] sm:$0xf]
    %v54 = vld [vmem:[#allocation2 + $0x14] sm:$0xf]
    %v55 = vld [vmem:[#allocation2 + $0x18] sm:$0xf]
    %v63 = vunpack.c.l.b16 %v49
    %v64 = vunpack.c.l.b16 %v50
    %v65 = vunpack.c.l.b16 %v51
    %v66 = vunpack.c.l.b16 %v52
    %v67 = vunpack.c.l.b16 %v53
    %v68 = vunpack.c.l.b16 %v54
    %v69 = vunpack.c.l.b16 %v55
    %v70 = vpack.c.b16 %v64, %v63
    %v71 = vpack.c.b16 %v66, %v65
    %v72 = vpack.c.b16 %v68, %v67
    %v73 = vpack.c.b16 %v69, %v69
    %v82 = vunpack.c.l.b16 %v41
    %v83 = vunpack.c.h.b16 %v41
    %v84 = vunpack.c.l.b16 %v42
    %v85 = vunpack.c.h.b16 %v42
    %v86 = vunpack.c.l.b16 %v43
    %v87 = vunpack.c.h.b16 %v43
    %v88 = vunpack.c.l.b16 %v44
    %v89 = vunpack.c.h.b16 %v44
    %v90 = vunpack.c.l.b16 %v45
    %v91 = vunpack.c.h.b16 %v45
    %v92 = vunpack.c.l.b16 %v46
    %v93 = vunpack.c.h.b16 %v46
    %v94 = vunpack.c.l.b16 %v47
    %v95 = vunpack.c.h.b16 %v47
    %v96 = vunpack.c.l.b16 %v48
    %v97 = vunpack.c.h.b16 %v48
    %v98 = vpack.c.b16 %v84, %v82
    %v99 = vpack.c.b16 %v85, %v83
    %v100 = vpack.c.b16 %v88, %v86
    %v101 = vpack.c.b16 %v89, %v87
    %v102 = vpack.c.b16 %v92, %v90
    %v103 = vpack.c.b16 %v93, %v91
    %v104 = vpack.c.b16 %v96, %v94
    %v105 = vpack.c.b16 %v97, %v95
    %vm114 = vcmask 523264
    %v116 = vsel %vm114, %v70, 0
    %v119 = vsel %vm114, %v71, 0
    %v122 = vsel %vm114, %v72, 0
    %v125 = vsel %vm114, %v73, 0
    %127 = vmatprep.subr.bf16.mxu0 %v99
    %128 = vmatpush1.bf16.msra.mxu0 %v98
    %129 = vmatprep.subr.bf16.mxu0 %v101
    %130 = vmatpush1.bf16.msra.mxu0 %v100
    %131 = vmatprep.subr.bf16.mxu0 %v103
    %132 = vmatpush1.bf16.msra.mxu0 %v102
    %133 = vmatprep.subr.bf16.mxu0 %v105
    %134 = vmatpush1.bf16.msra.mxu0 %v104
    %135 = vmatprep.subr.bf16.mxu0 0
    %136 = vmatpush1.bf16.msra.mxu0 0
    %137 = vmatprep.subr.bf16.mxu0 0
    %138 = vmatpush1.bf16.msra.mxu0 0
    %139 = vmatprep.subr.bf16.mxu0 0
    %140 = vmatpush1.bf16.msra.mxu0 0
    %141 = vmatprep.subr.bf16.mxu0 0
    %142 = vmatpush1.bf16.msra.mxu0 0
    %143 = vmatprep.subr.bf16.mxu0 0
    %144 = vmatpush1.bf16.msra.mxu0 0
    %145 = vmatprep.subr.bf16.mxu0 0
    %146 = vmatpush1.bf16.msra.mxu0 0
    %147 = vmatprep.subr.bf16.mxu0 0
    %148 = vmatpush1.bf16.msra.mxu0 0
    %149 = vmatprep.subr.bf16.mxu0 0
    %150 = vmatpush1.bf16.msra.mxu0 0
    %151 = vmatprep.subr.bf16.mxu0 0
    %152 = vmatpush1.bf16.msra.mxu0 0
    %153 = vmatprep.subr.bf16.mxu0 0
    %154 = vmatpush1.bf16.msra.mxu0 0
    %155 = vmatprep.subr.bf16.mxu0 0
    %156 = vmatpush1.bf16.msra.mxu0 0
    %157 = vmatprep.subr.bf16.mxu0 0
    %158 = vmatpush1.bf16.msra.mxu0 0
    %159 = vmatprep.mubr.bf16.mxu0 0
    %160 = vmatmul.mubr.bf16.gmra.mrb[0].mxu0 %v116
    %v161 = vpop.f32.mrb[0].mxu0
    %v162 = vadd.f32 0.0, %v161
    %v163 = vpop.f32.mrb[0].mxu0
    %v164 = vadd.f32 0.0, %v163
    %v165 = vpop.f32.mrb[0].mxu0
    %v166 = vadd.f32 0.0, %v165
    %v167 = vpop.f32.mrb[0].mxu0
    %v168 = vadd.f32 0.0, %v167
    %169 = vmatprep.mubr.bf16.mxu0 0
    %170 = vmatmul.mubr.bf16.gmra.mrb[0].mxu0 %v119
    %v171 = vpop.f32.mrb[0].mxu0
    %v172 = vadd.f32 0.0, %v171
    %v173 = vpop.f32.mrb[0].mxu0
    %v174 = vadd.f32 0.0, %v173
    %v175 = vpop.f32.mrb[0].mxu0
    %v176 = vadd.f32 0.0, %v175
    %v177 = vpop.f32.mrb[0].mxu0
    %v178 = vadd.f32 0.0, %v177
    %179 = vmatprep.mubr.bf16.mxu0 0
    %180 = vmatmul.mubr.bf16.gmra.mrb[0].mxu0 %v122
    %v181 = vpop.f32.mrb[0].mxu0
    %v182 = vadd.f32 0.0, %v181
    %v183 = vpop.f32.mrb[0].mxu0
    %v184 = vadd.f32 0.0, %v183
    %v185 = vpop.f32.mrb[0].mxu0
    %v186 = vadd.f32 0.0, %v185
    %v187 = vpop.f32.mrb[0].mxu0
    %v188 = vadd.f32 0.0, %v187
    %189 = vmatprep.mubr.bf16.mxu0 0
    %190 = vmatmul.mubr.bf16.gmra.mrb[0].mxu0 %v125
    %v191 = vpop.f32.mrb[0].mxu0
    %v192 = vadd.f32 0.0, %v191
    %v193 = vpop.f32.mrb[0].mxu0
    %v194 = vadd.f32 0.0, %v193
    %v195 = vpop.f32.mrb[0].mxu0
    %v196 = vpop.f32.mrb[0].mxu0
    %197 = vdwg.mxu0
    %v198 = vmul.f32 %v162, %v162
    %v199 = vmul.f32 %v166, %v166
    %v200 = vmul.f32 %v172, %v172
    %v201 = vmul.f32 %v176, %v176
    %v202 = vmul.f32 %v182, %v182
    %v203 = vmul.f32 %v186, %v186
    %v204 = vmul.f32 %v192, %v192
    %v205 = vmul.f32 %v164, %v164
    %v206 = vmul.f32 %v168, %v168
    %v207 = vmul.f32 %v174, %v174
    %v208 = vmul.f32 %v178, %v178
    %v209 = vmul.f32 %v184, %v184
    %v210 = vmul.f32 %v188, %v188
    %v211 = vmul.f32 %v194, %v194
    %v212 = vadd.f32 %v198, %v205
    %v213 = vadd.f32 %v199, %v206
    %v214 = vadd.f32 %v200, %v207
    %v215 = vadd.f32 %v201, %v208
    %v216 = vadd.f32 %v202, %v209
    %v217 = vadd.f32 %v203, %v210
    %v218 = vadd.f32 %v204, %v211
    %v219 = vmin.f32 %v212, %v213
    %v220 = vmax.f32 %v212, %v213
    %v221 = vmin.f32 %v214, %v215
    %v222 = vmax.f32 %v214, %v215
    %v223 = vmin.f32 %v216, %v217
    %v224 = vmax.f32 %v216, %v217
    %v225 = vmax.f32 %v218, inf
    %v226 = vmin.f32 %v219, %v221
    %v227 = vmax.f32 %v219, %v221
    %v228 = vmin.f32 %v220, %v222
    %v229 = vmax.f32 %v220, %v222
    %v230 = vmin.f32 %v223, %v218
    %v231 = vmax.f32 %v223, %v218
    %v232 = vmin.f32 %v224, %v225
    %v233 = vmax.f32 %v224, %v225
    %v234 = vmin.f32 %v228, %v227
    %v235 = vmax.f32 %v228, %v227
    %v236 = vmin.f32 %v232, %v231
    %v237 = vmax.f32 %v232, %v231
    %v238 = vmax.f32 %v226, %v230
    %v239 = vmax.f32 %v234, %v236
    %v240 = vmin.f32 %v235, %v237
    %v241 = vmin.f32 %v229, %v233
    %v242 = vmax.f32 %v240, %v238
    %v243 = vmin.f32 %v241, %v239
    %v244 = vmin.f32 %v243, %v242
    %245 = vst [vmem:[#allocation7] sm:$0xff] %v244
    // Predicated region
    $region18: #{tpu_custom_call.1} parent=1 // pred_check
      _
    $region19: #{tpu_custom_call.1} parent=1 // pred_check_branch
      %247 = sbr.rel (0) target = $region21
    $region20: #{tpu_custom_call.1} parent=1 // pred_region
      %s249 = ssub.s32 128, 128
      %250 = vsyncadd [#allocation4], %s249
      %s252 = sshll.u32 [#allocation7], 4
      %s253 = int_to_ptr.vmem [resolvable:$true] %s252
      %255 = dma.vmem_to_hbm [thread:$0]  %s253, 128, %s2, [#allocation4]
    $region21: #{tpu_custom_call.1} parent=1 // pred_fallthru
      _
    // Predicated region
    $region22: #{tpu_custom_call.1} parent=1 // pred_check
      _
    $region23: #{tpu_custom_call.1} parent=1 // pred_check_branch
      %257 = sbr.rel (0) target = $region25
    $region24: #{tpu_custom_call.1} parent=1 // pred_region
      %258 = dma.done [#allocation4], 128
    $region25: #{tpu_custom_call.1} parent=1 // pred_fallthru
      _
    %259 = vsyncpa [#allocation3], 1
    %260 = vsyncpa [#allocation6], 1
    %261 = vsyncpa [#allocation4], 1

// kernel: tpu_custom_call.1
$region0: #{tpu_custom_call.1}
  #allocation0 [shape = 'u32[]', space=smem, size = 0x4, offset = 0x4, fixed_abs, tag = 'smem constant byte address 0x4 - core index']
  #allocation1 [shape = 'u32[144,128]{1,0:T(1,128)}', space=vmem, size = 0x12000, scoped, tag = 'internal scratch']
  %s0 = inlined_call_operand.hbm [shape: bf16[56,64], index: 0, kind: input, shape index: {}]
  %s1 = inlined_call_operand.hbm [shape: bf16[64,256], index: 1, kind: input, shape index: {}]
  %s2 = inlined_call_operand.hbm [shape: f32[8,128], index: 2, kind: output, shape index: {}]
  %s3 = sld [smem:[#allocation0]]
  $region26: #{tpu_custom_call.1} parent=0
    _
  %s5 = ssub.s32 1, %s3
  %s6 = scalar_select 0, %s5, %s3
  $region1: #{tpu_custom_call.1} parent=0
    #allocation2 [shape = 'u8[14336]{0}', space=vmem, size = 0x3800, scoped, tag = 'input window, operand 0, single buffered']
    #allocation3 [shape = 's32[1]{0}', space=sflag, size = 0x4, scoped, tag = 'scoped memory for tpu_custom_call.1']
    #allocation4 [shape = 's32[1]{0}', space=sflag, size = 0x4, scoped, tag = 'scoped memory for tpu_custom_call.1']
    #allocation5 [shape = 'u8[32768]{0}', space=vmem, size = 0x8000, scoped, tag = 'input window, operand 1, single buffered']
    #allocation6 [shape = 's32[1]{0}', space=sflag, size = 0x4, scoped, tag = 'scoped memory for tpu_custom_call.1']
    #allocation7 [shape = 'u8[4096]{0}', space=vmem, size = 0x1000, scoped, tag = 'output window, operand 0, single buffered']
    %7 = vsyncpa [#allocation3], 0
    %8 = vsyncpa [#allocation6], 0
    %9 = vsyncpa [#allocation4], 0
    // Predicated region
    $region2: #{tpu_custom_call.1} parent=1 // pred_check
      _
    $region3: #{tpu_custom_call.1} parent=1 // pred_check_branch
      %11 = sbr.rel (0) target = $region5
    $region4: #{tpu_custom_call.1} parent=1 // pred_region
      %s13 = ssub.s32 448, 448
      %14 = vsyncadd [#allocation3], %s13
      %s15 = sshll.u32 [#allocation2], 4
      %s16 = int_to_ptr.vmem [resolvable:$true] %s15
      %21 = dma.hbm_to_vmem [thread:$0]  %s0, 448, %s16, [#allocation3], 64, 64, 4
    $region5: #{tpu_custom_call.1} parent=1 // pred_fallthru
      _
    // Predicated region
    $region6: #{tpu_custom_call.1} parent=1 // pred_check
      _
    $region7: #{tpu_custom_call.1} parent=1 // pred_check_branch
      %23 = sbr.rel (0) target = $region9
    $region8: #{tpu_custom_call.1} parent=1 // pred_region
      %s25 = ssub.s32 1024, 1024
      %26 = vsyncadd [#allocation6], %s25
      %s27 = sshll.u32 [#allocation5], 4
      %s28 = int_to_ptr.vmem [resolvable:$true] %s27
      %33 = dma.hbm_to_vmem [thread:$0]  %s1, 1024, %s28, [#allocation6], 128, 128, 8
    $region9: #{tpu_custom_call.1} parent=1 // pred_fallthru
      _
    // Predicated region
    $region10: #{tpu_custom_call.1} parent=1 // pred_check
      _
    $region11: #{tpu_custom_call.1} parent=1 // pred_check_branch
      %35 = sbr.rel (0) target = $region13
    $region12: #{tpu_custom_call.1} parent=1 // pred_region
      %36 = dma.done [#allocation3], 448
    $region13: #{tpu_custom_call.1} parent=1 // pred_fallthru
      _
    // Predicated region
    $region14: #{tpu_custom_call.1} parent=1 // pred_check
      _
    $region15: #{tpu_custom_call.1} parent=1 // pred_check_branch
      %38 = sbr.rel (0) target = $region17
    $region16: #{tpu_custom_call.1} parent=1 // pred_region
      %39 = dma.done [#allocation6], 1024
    $region17: #{tpu_custom_call.1} parent=1 // pred_fallthru
      _
    %v41 = vld [vmem:[#allocation5] sm:$0xff]
    %v42 = vld [vmem:[#allocation5 + $0x8] sm:$0xff]
    %v43 = vld [vmem:[#allocation5 + $0x10] sm:$0xff]
    %v44 = vld [vmem:[#allocation5 + $0x18] sm:$0xff]
    %v45 = vld [vmem:[#allocation5 + $0x20] sm:$0xff]
    %v46 = vld [vmem:[#allocation5 + $0x28] sm:$0xff]
    %v47 = vld [vmem:[#allocation5 + $0x30] sm:$0xff]
    %v48 = vld [vmem:[#allocation5 + $0x38] sm:$0xff]
    %v49 = vld [vmem:[#allocation2] sm:$0xf]
    %v50 = vld [vmem:[#allocation2 + $0x4] sm:$0xf]
    %v51 = vld [vmem:[#allocation2 + $0x8] sm:$0xf]
    %v52 = vld [vmem:[#allocation2 + $0xc] sm:$0xf]
    %v53 = vld [vmem:[#allocation2 + $0x10] sm:$0xf]
    %v54 = vld [vmem:[#allocation2 + $0x14] sm:$0xf]
    %v55 = vld [vmem:[#allocation2 + $0x18] sm:$0xf]
    %v63 = vunpack.c.l.b16 %v49
    %v64 = vunpack.c.l.b16 %v50
    %v65 = vunpack.c.l.b16 %v51
    %v66 = vunpack.c.l.b16 %v52
    %v67 = vunpack.c.l.b16 %v53
    %v68 = vunpack.c.l.b16 %v54
    %v69 = vunpack.c.l.b16 %v55
    %v70 = vpack.c.b16 %v64, %v63
    %v71 = vpack.c.b16 %v66, %v65
    %v72 = vpack.c.b16 %v68, %v67
    %v73 = vpack.c.b16 %v69, %v69
    %v82 = vunpack.c.l.b16 %v41
    %v83 = vunpack.c.h.b16 %v41
    %v84 = vunpack.c.l.b16 %v42
    %v85 = vunpack.c.h.b16 %v42
    %v86 = vunpack.c.l.b16 %v43
    %v87 = vunpack.c.h.b16 %v43
    %v88 = vunpack.c.l.b16 %v44
    %v89 = vunpack.c.h.b16 %v44
    %v90 = vunpack.c.l.b16 %v45
    %v91 = vunpack.c.h.b16 %v45
    %v92 = vunpack.c.l.b16 %v46
    %v93 = vunpack.c.h.b16 %v46
    %v94 = vunpack.c.l.b16 %v47
    %v95 = vunpack.c.h.b16 %v47
    %v96 = vunpack.c.l.b16 %v48
    %v97 = vunpack.c.h.b16 %v48
    %v98 = vpack.c.b16 %v84, %v82
    %v99 = vpack.c.b16 %v85, %v83
    %v100 = vpack.c.b16 %v88, %v86
    %v101 = vpack.c.b16 %v89, %v87
    %v102 = vpack.c.b16 %v92, %v90
    %v103 = vpack.c.b16 %v93, %v91
    %v104 = vpack.c.b16 %v96, %v94
    %v105 = vpack.c.b16 %v97, %v95
    %vm114 = vcmask 523264
    %v116 = vsel %vm114, %v70, 0
    %v119 = vsel %vm114, %v71, 0
    %v122 = vsel %vm114, %v72, 0
    %v125 = vsel %vm114, %v73, 0
    %127 = vmatprep.subr.bf16.mxu0 %v99
    %128 = vmatpush1.bf16.msra.mxu0 %v98
    %129 = vmatprep.subr.bf16.mxu0 %v101
    %130 = vmatpush1.bf16.msra.mxu0 %v100
    %131 = vmatprep.subr.bf16.mxu0 %v103
    %132 = vmatpush1.bf16.msra.mxu0 %v102
    %133 = vmatprep.subr.bf16.mxu0 %v105
    %134 = vmatpush1.bf16.msra.mxu0 %v104
    %135 = vmatprep.subr.bf16.mxu0 0
    %136 = vmatpush1.bf16.msra.mxu0 0
    %137 = vmatprep.subr.bf16.mxu0 0
    %138 = vmatpush1.bf16.msra.mxu0 0
    %139 = vmatprep.subr.bf16.mxu0 0
    %140 = vmatpush1.bf16.msra.mxu0 0
    %141 = vmatprep.subr.bf16.mxu0 0
    %142 = vmatpush1.bf16.msra.mxu0 0
    %143 = vmatprep.subr.bf16.mxu0 0
    %144 = vmatpush1.bf16.msra.mxu0 0
    %145 = vmatprep.subr.bf16.mxu0 0
    %146 = vmatpush1.bf16.msra.mxu0 0
    %147 = vmatprep.subr.bf16.mxu0 0
    %148 = vmatpush1.bf16.msra.mxu0 0
    %149 = vmatprep.subr.bf16.mxu0 0
    %150 = vmatpush1.bf16.msra.mxu0 0
    %151 = vmatprep.subr.bf16.mxu0 0
    %152 = vmatpush1.bf16.msra.mxu0 0
    %153 = vmatprep.subr.bf16.mxu0 0
    %154 = vmatpush1.bf16.msra.mxu0 0
    %155 = vmatprep.subr.bf16.mxu0 0
    %156 = vmatpush1.bf16.msra.mxu0 0
    %157 = vmatprep.subr.bf16.mxu0 0
    %158 = vmatpush1.bf16.msra.mxu0 0
    %159 = vmatprep.mubr.bf16.mxu0 0
    %160 = vmatmul.mubr.bf16.gmra.mrb[0].mxu0 %v116
    %v161 = vpop.f32.mrb[0].mxu0
    %v162 = vadd.f32 0.0, %v161
    %v163 = vpop.f32.mrb[0].mxu0
    %v164 = vadd.f32 0.0, %v163
    %v165 = vpop.f32.mrb[0].mxu0
    %v166 = vadd.f32 0.0, %v165
    %v167 = vpop.f32.mrb[0].mxu0
    %v168 = vadd.f32 0.0, %v167
    %169 = vmatprep.mubr.bf16.mxu0 0
    %170 = vmatmul.mubr.bf16.gmra.mrb[0].mxu0 %v119
    %v171 = vpop.f32.mrb[0].mxu0
    %v172 = vadd.f32 0.0, %v171
    %v173 = vpop.f32.mrb[0].mxu0
    %v174 = vadd.f32 0.0, %v173
    %v175 = vpop.f32.mrb[0].mxu0
    %v176 = vadd.f32 0.0, %v175
    %v177 = vpop.f32.mrb[0].mxu0
    %v178 = vadd.f32 0.0, %v177
    %179 = vmatprep.mubr.bf16.mxu0 0
    %180 = vmatmul.mubr.bf16.gmra.mrb[0].mxu0 %v122
    %v181 = vpop.f32.mrb[0].mxu0
    %v182 = vadd.f32 0.0, %v181
    %v183 = vpop.f32.mrb[0].mxu0
    %v184 = vadd.f32 0.0, %v183
    %v185 = vpop.f32.mrb[0].mxu0
    %v186 = vadd.f32 0.0, %v185
    %v187 = vpop.f32.mrb[0].mxu0
    %v188 = vadd.f32 0.0, %v187
    %189 = vmatprep.mubr.bf16.mxu0 0
    %190 = vmatmul.mubr.bf16.gmra.mrb[0].mxu0 %v125
    %v191 = vpop.f32.mrb[0].mxu0
    %v192 = vadd.f32 0.0, %v191
    %v193 = vpop.f32.mrb[0].mxu0
    %v194 = vadd.f32 0.0, %v193
    %v195 = vpop.f32.mrb[0].mxu0
    %v196 = vpop.f32.mrb[0].mxu0
    %197 = vdwg.mxu0
    %v198 = vmul.f32 %v162, %v162
    %v199 = vmul.f32 %v166, %v166
    %v200 = vmul.f32 %v172, %v172
    %v201 = vmul.f32 %v176, %v176
    %v202 = vmul.f32 %v182, %v182
    %v203 = vmul.f32 %v186, %v186
    %v204 = vmul.f32 %v192, %v192
    %v205 = vmul.f32 %v164, %v164
    %v206 = vmul.f32 %v168, %v168
    %v207 = vmul.f32 %v174, %v174
    %v208 = vmul.f32 %v178, %v178
    %v209 = vmul.f32 %v184, %v184
    %v210 = vmul.f32 %v188, %v188
    %v211 = vmul.f32 %v194, %v194
    %v212 = vadd.f32 %v198, %v205
    %v213 = vadd.f32 %v199, %v206
    %v214 = vadd.f32 %v200, %v207
    %v215 = vadd.f32 %v201, %v208
    %v216 = vadd.f32 %v202, %v209
    %v217 = vadd.f32 %v203, %v210
    %v218 = vadd.f32 %v204, %v211
    %v219 = vmin.f32 %v212, %v213
    %v220 = vmax.f32 %v212, %v213
    %v221 = vmin.f32 %v214, %v215
    %v222 = vmax.f32 %v214, %v215
    %v223 = vmin.f32 %v216, %v217
    %v224 = vmax.f32 %v216, %v217
    %v225 = vmax.f32 %v218, inf
    %v226 = vmin.f32 %v219, %v221
    %v227 = vmax.f32 %v219, %v221
    %v228 = vmin.f32 %v220, %v222
    %v229 = vmax.f32 %v220, %v222
    %v230 = vmin.f32 %v223, %v218
    %v231 = vmax.f32 %v223, %v218
    %v232 = vmin.f32 %v224, %v225
    %v233 = vmax.f32 %v224, %v225
    %v234 = vmin.f32 %v228, %v227
    %v235 = vmax.f32 %v228, %v227
    %v236 = vmin.f32 %v232, %v231
    %v237 = vmax.f32 %v232, %v231
    %v238 = vmax.f32 %v226, %v230
    %v239 = vmax.f32 %v234, %v236
    %v240 = vmin.f32 %v235, %v237
    %v241 = vmin.f32 %v229, %v233
    %v242 = vmax.f32 %v240, %v238
    %v243 = vmin.f32 %v241, %v239
    %v244 = vmin.f32 %v243, %v242
    %245 = vst [vmem:[#allocation7] sm:$0xff] %v244
    // Predicated region
    $region18: #{tpu_custom_call.1} parent=1 // pred_check
      _
    $region19: #{tpu_custom_call.1} parent=1 // pred_check_branch
      %247 = sbr.rel (0) target = $region21
    $region20: #{tpu_custom_call.1} parent=1 // pred_region
      %s249 = ssub.s32 128, 128
      %250 = vsyncadd [#allocation4], %s249
      %s252 = sshll.u32 [#allocation7], 4
      %s253 = int_to_ptr.vmem [resolvable:$true] %s252
      %255 = dma.vmem_to_hbm [thread:$0]  %s253, 128, %s2, [#allocation4]
    $region21: #{tpu_custom_call.1} parent=1 // pred_fallthru
      _
    // Predicated region
    $region22: #{tpu_custom_call.1} parent=1 // pred_check
      _
    $region23: #{tpu_custom_call.1} parent=1 // pred_check_branch
      %257 = sbr.rel (0) target = $region25
    $region24: #{tpu_custom_call.1} parent=1 // pred_region
      %258 = dma.done [#allocation4], 128
    $region25: #{tpu_custom_call.1} parent=1 // pred_fallthru
      _
    %259 = vsyncpa [#allocation3], 1
    %260 = vsyncpa [#allocation6], 1
    %261 = vsyncpa [#allocation4], 1

</llo_original>
